<compile_context>
chip_gen: v6e
topology: v6e:2x2x1
jax: 0.10.0
libtpu: 0.0.40
codegen_flags: <defaults>
</compile_context>

<pallas_src>
import functools

import jax
import jax.numpy as jnp
from jax.experimental import pallas as pl
from jax.experimental.pallas import tpu as pltpu

C_IN = 192          # channels of x (and of self.unet)
C_OUT = 192         # output channels of the final 1x1 BasicConv2d
BN_EPS = 1e-3


# ---------------------------------------------------------------------------
# Kernels (NCHW-native: channels on sublanes, spatial pixels on lanes)
# ---------------------------------------------------------------------------

def _kernel_two_matmul(x_ref, unet_ref, w1_ref, w2_ref, bias_ref, o_ref):
    # x_ref, unet_ref: (1, C_IN, TS); w1/w2: (C_OUT, C_IN); bias: (C_OUT, 1) f32.
    x = x_ref[0]
    un = unet_ref[0]
    acc = jnp.dot(w1_ref[...], x, preferred_element_type=jnp.float32)
    acc = acc + jnp.dot(w2_ref[...], x * un, preferred_element_type=jnp.float32)
    y = acc + bias_ref[...]
    o_ref[0] = jnp.maximum(y, 0.0).astype(o_ref.dtype)


def _kernel_single_matmul(x_ref, unet_ref, w12_ref, bias_ref, o_ref):
    # v5e + f32 path: one K=384 matmul (3 full 128-wide K passes on the v5e MXU).
    x = x_ref[0]
    un = unet_ref[0]
    k = jnp.concatenate([x, x * un], axis=0)            # (2*C_IN, TS), sublane concat
    acc = jnp.dot(w12_ref[...], k, preferred_element_type=jnp.float32)
    y = acc + bias_ref[...]
    o_ref[0] = jnp.maximum(y, 0.0).astype(o_ref.dtype)


# ---------------------------------------------------------------------------
# Config helpers (run outside jit; everything static)
# ---------------------------------------------------------------------------

def _cdiv(a, b):
    return -(-a // b)


def _device_kind():
    try:
        return jax.devices()[0].device_kind.lower()
    except Exception:
        return ""


def _vmem_estimate_bytes(ts, itemsize):
    # Double-buffered streamed tiles (x, unet, out) + resident weights (double-
    # buffered by default) + rough f32 temporaries (accumulator, x*unet, concat).
    stream = 2 * (2 * C_IN + C_OUT) * ts * itemsize
    weights = 2 * (2 * C_OUT * C_IN * itemsize + C_OUT * 4)
    temps = 4 * C_OUT * ts * 4
    return stream + weights + temps


def _pick_tile(hw, n, pixel_tile, itemsize, vmem_cap, want_two_blocks):
    if hw < 128:
        # Under-filled lanes; see header note — no transpose added here.
        return hw
    ts = min(pixel_tile, hw)
    ts = max(128, (ts // 128) * 128)
    # v7x: make sure both TensorCores get at least one grid step.
    if want_two_blocks and n * _cdiv(hw, ts) < 2 and hw >= 256:
        ts = max(128, (ts // 2 // 128) * 128)
    # Keep the estimated VMEM footprint under the cap.
    while _vmem_estimate_bytes(ts, itemsize) > vmem_cap and ts > 256:
        ts = max(128, (ts // 2 // 128) * 128)
    return ts


# ---------------------------------------------------------------------------
# Jitted implementation
# ---------------------------------------------------------------------------

@functools.partial(jax.jit,
                   static_argnames=("ts", "single_matmul", "vmem_limit_bytes"))
def _forward_impl(x_nchw, unet_nchw, w_conv, bn_gamma, bn_beta, bn_mean, bn_var,
                  *, ts, single_matmul, vmem_limit_bytes):
    n, c, h, w = x_nchw.shape
    hw = h * w

    # NCHW-native: merge H,W (free reshape, no transpose / no extra HBM pass).
    x3d = x_nchw.reshape(n, c, hw)
    u3d = unet_nchw.reshape(n, c, hw)

    # 1x1 conv weight (Cout, 2*Cin, 1, 1) -> (Cout, 2*Cin); first Cin columns act
    # on x, last Cin on u = x*unet.  Fold the BN scale into the weight rows.
    w2d = w_conv.reshape(C_OUT, 2 * C_IN).astype(jnp.float32)
    inv_std = bn_gamma.astype(jnp.float32) / jnp.sqrt(
        bn_var.astype(jnp.float32) + BN_EPS)
    w_folded = w2d * inv_std[:, None]
    bias = (bn_beta.astype(jnp.float32)
            - bn_mean.astype(jnp.float32) * inv_std).reshape(C_OUT, 1)

    grid = (n, pl.cdiv(hw, ts))

    itemsize = x_nchw.dtype.itemsize
    cost = pl.CostEstimate(
        flops=4 * n * hw * C_IN * C_OUT + n * C_IN * hw,
        transcendentals=0,
        bytes_accessed=3 * n * C_IN * hw * itemsize
        + 2 * C_OUT * C_IN * itemsize + C_OUT * 4,
    )
    cp = pltpu.CompilerParams(
        dimension_semantics=("parallel", "parallel"),
        vmem_limit_bytes=vmem_limit_bytes,
    )

    x_spec = pl.BlockSpec((1, C_IN, ts), lambda b, s: (b, 0, s))
    u_spec = pl.BlockSpec((1, C_IN, ts), lambda b, s: (b, 0, s))
    out_spec = pl.BlockSpec((1, C_OUT, ts), lambda b, s: (b, 0, s))
    bias_spec = pl.BlockSpec((C_OUT, 1), lambda b, s: (0, 0))

    if single_matmul:
        w12 = w_folded.astype(x_nchw.dtype)                       # (C_OUT, 2*C_IN)
        kernel = _kernel_single_matmul
        in_specs = [x_spec, u_spec,
                    pl.BlockSpec((C_OUT, 2 * C_IN), lambda b, s: (0, 0)),
                    bias_spec]
        operands = (x3d, u3d, w12, bias)
    else:
        w1 = w_folded[:, :C_IN].astype(x_nchw.dtype)              # applied to x
        w2 = w_folded[:, C_IN:].astype(x_nchw.dtype)              # applied to x*unet
        kernel = _kernel_two_matmul
        in_specs = [x_spec, u_spec,
                    pl.BlockSpec((C_OUT, C_IN), lambda b, s: (0, 0)),
                    pl.BlockSpec((C_OUT, C_IN), lambda b, s: (0, 0)),
                    bias_spec]
        operands = (x3d, u3d, w1, w2, bias)

    out3d = pl.pallas_call(
        kernel,
        out_shape=jax.ShapeDtypeStruct((n, C_OUT, hw), x_nchw.dtype),
        grid_spec=pltpu.PrefetchScalarGridSpec(
            num_scalar_prefetch=0,
            grid=grid,
            in_specs=in_specs,
            out_specs=out_spec,
        ),
        compiler_params=cp,
        cost_estimate=cost,
    )(*operands)

    return out3d.reshape(n, C_OUT, h, w)


# ---------------------------------------------------------------------------
# Public wrapper (generation-aware configuration)
# ---------------------------------------------------------------------------

def concat_layer_forward(x_nchw, unet_nchw, w_conv, bn_gamma, bn_beta,
                         bn_mean, bn_var, *, pixel_tile=None):
    """x_nchw, unet_nchw: (N, 192, H, W); w_conv: (192, 384, 1, 1)."""
    n, c, h, w = x_nchw.shape
    assert c == C_IN, c
    hw = h * w
    itemsize = jnp.dtype(x_nchw.dtype).itemsize

    kind = _device_kind()
    is_v5 = "v5" in kind
    is_v7 = "v7" in kind

    if pixel_tile is None:
        pixel_tile = 4096 if is_v7 else 2048
    vmem_cap = (48 << 20) if is_v7 else (100 << 20)

    ts = _pick_tile(hw, n, pixel_tile, itemsize, vmem_cap, want_two_blocks=is_v7)
    vmem_limit = min(max(32 << 20, _vmem_estimate_bytes(ts, itemsize) + (4 << 20)),
                     vmem_cap)

    # v5* with f32 activations is MXU-bound: use the single K=384 matmul form.
    single_matmul = bool(is_v5 and x_nchw.dtype == jnp.float32)

    return _forward_impl(x_nchw, unet_nchw, w_conv, bn_gamma, bn_beta,
                         bn_mean, bn_var,
                         ts=int(ts), single_matmul=single_matmul,
                         vmem_limit_bytes=int(vmem_limit))


# ---------------------------------------------------------------------------
# Reference + self-test
# ---------------------------------------------------------------------------

def _reference(x, unet, w_conv, g, b, m, v):
    """Pure-JAX reference of the interpreted forward pass (NCHW)."""
    u = x * unet
    cat = jnp.concatenate([x, u], axis=1)                       # (N, 384, H, W)
    w2d = w_conv.reshape(C_OUT, 2 * C_IN)                       # 1x1 conv
    y = jnp.einsum("oc,nchw->nohw", w2d, cat)
    scale = (g / jnp.sqrt(v + BN_EPS)).reshape(1, C_OUT, 1, 1)
    bias = (b - m * g / jnp.sqrt(v + BN_EPS)).reshape(1, C_OUT, 1, 1)
    return jnp.maximum(y * scale + bias, 0.0)


if __name__ == "__main__":
    key = jax.random.PRNGKey(0)
    kx, ku, kw, kg, kb, km, kv, kx2, ku2 = jax.random.split(key, 9)

    # Parameters of the final BasicConv2d(384, 192, k=1).
    w_conv = jax.random.normal(kw, (C_OUT, 2 * C_IN, 1, 1), dtype=jnp.float32) * 0.05
    bn_gamma = 1.0 + 0.1 * jax.random.normal(kg, (C_OUT,), dtype=jnp.float32)
    bn_beta = 0.1 * jax.random.normal(kb, (C_OUT,), dtype=jnp.float32)
    bn_mean = 0.1 * jax.random.normal(km, (C_OUT,), dtype=jnp.float32)
    bn_var = jnp.abs(jax.random.normal(kv, (C_OUT,), dtype=jnp.float32)) + 0.5

    # Case 1: small batch, 128-aligned spatial extent.
    N, H, W = 2, 16, 16
    x = jax.random.normal(kx, (N, C_IN, H, W), dtype=jnp.float32)
    # self.unet is a fixed tensor in the module; initialize deterministically.
    # TODO(synk): the 5-layer BasicConv2d stem producing self.unet in __init__ is
    # not re-run here; its output is modeled as this deterministic tensor.
    unet = jax.random.normal(ku, (N, C_IN, H, W), dtype=jnp.float32)

    out = jax.block_until_ready(
        concat_layer_forward(x, unet, w_conv, bn_gamma, bn_beta, bn_mean, bn_var))
    ref = _reference(x, unet, w_conv, bn_gamma, bn_beta, bn_mean, bn_var)
    assert out.shape == (N, C_OUT, H, W), out.shape
    assert jnp.allclose(out, ref, atol=2e-4, rtol=1e-4), float(jnp.abs(out - ref).max())

    # Case 2: non-multiple-of-128 spatial extent (exercises the partial tail block).
    N2, H2, W2 = 1, 19, 19
    x2 = jax.random.normal(kx2, (N2, C_IN, H2, W2), dtype=jnp.float32)
    unet2 = jax.random.normal(ku2, (N2, C_IN, H2, W2), dtype=jnp.float32)
    out2 = jax.block_until_ready(
        concat_layer_forward(x2, unet2, w_conv, bn_gamma, bn_beta, bn_mean, bn_var))
    ref2 = _reference(x2, unet2, w_conv, bn_gamma, bn_beta, bn_mean, bn_var)
    assert out2.shape == (N2, C_OUT, H2, W2), out2.shape
    assert jnp.allclose(out2, ref2, atol=2e-4, rtol=1e-4), float(jnp.abs(out2 - ref2).max())

    print("KERNEL_OK")
</pallas_src>

<mosaic_0001>
module attributes {stable_mosaic.version = 11 : i64} {
  func.func @_kernel_two_matmul(%arg0: i32, %arg1: i32, %arg2: memref<1x192x256xf32, #tpu.memory_space<vmem>>, %arg3: memref<1x192x256xf32, #tpu.memory_space<vmem>>, %arg4: memref<192x192xf32, #tpu.memory_space<vmem>>, %arg5: memref<192x192xf32, #tpu.memory_space<vmem>>, %arg6: memref<192x1xf32, #tpu.memory_space<vmem>>, %arg7: memref<1x192x256xf32, #tpu.memory_space<vmem>>) attributes {dimension_semantics = [#tpu.dimension_semantics<parallel>, #tpu.dimension_semantics<parallel>], iteration_bounds = array<i64: 2, 1>, scalar_prefetch = 0 : i64, scratch_operands = 0 : i64, tpu.core_type = #tpu.core_type<tc>, window_params = [{transform_indices = @transform_0, window_bounds = array<i64: 1, 192, 256>}, {transform_indices = @transform_1, window_bounds = array<i64: 1, 192, 256>}, {pipeline_mode = #tpu.pipeline_mode<synchronous>, transform_indices = @transform_2, window_bounds = array<i64: 192, 192>}, {pipeline_mode = #tpu.pipeline_mode<synchronous>, transform_indices = @transform_3, window_bounds = array<i64: 192, 192>}, {pipeline_mode = #tpu.pipeline_mode<synchronous>, transform_indices = @transform_4, window_bounds = array<i64: 192, 1>}, {transform_indices = @transform_5, window_bounds = array<i64: 1, 192, 256>}]} {
    %c0 = arith.constant 0 : index
    %c0_0 = arith.constant 0 : index
    %c0_1 = arith.constant 0 : index
    %0 = vector.load %arg2[%c0, %c0_0, %c0_1] : memref<1x192x256xf32, #tpu.memory_space<vmem>>, vector<1x192x256xf32>
    %1 = vector.shape_cast %0 : vector<1x192x256xf32> to vector<192x256xf32>
    %c0_2 = arith.constant 0 : index
    %c0_3 = arith.constant 0 : index
    %c0_4 = arith.constant 0 : index
    %2 = vector.load %arg3[%c0_2, %c0_3, %c0_4] : memref<1x192x256xf32, #tpu.memory_space<vmem>>, vector<1x192x256xf32>
    %3 = vector.shape_cast %2 : vector<1x192x256xf32> to vector<192x256xf32>
    %c0_5 = arith.constant 0 : index
    %c0_6 = arith.constant 0 : index
    %4 = vector.load %arg4[%c0_5, %c0_6] : memref<192x192xf32, #tpu.memory_space<vmem>>, vector<192x192xf32>
    %cst = arith.constant dense<0.000000e+00> : vector<192x256xf32>
    %5 = tpu.matmul %4, %1, %cst {dimension_numbers = #tpu.dot_dimension_numbers<[1], [0], [0], [1], [0, 0, 1, 1], [], []>} : vector<192x192xf32>, vector<192x256xf32>, vector<192x256xf32> -> vector<192x256xf32>
    %c0_7 = arith.constant 0 : index
    %c0_8 = arith.constant 0 : index
    %6 = vector.load %arg5[%c0_7, %c0_8] : memref<192x192xf32, #tpu.memory_space<vmem>>, vector<192x192xf32>
    %7 = arith.mulf %1, %3 : vector<192x256xf32>
    %cst_9 = arith.constant dense<0.000000e+00> : vector<192x256xf32>
    %8 = tpu.matmul %6, %7, %cst_9 {dimension_numbers = #tpu.dot_dimension_numbers<[1], [0], [0], [1], [0, 0, 1, 1], [], []>} : vector<192x192xf32>, vector<192x256xf32>, vector<192x256xf32> -> vector<192x256xf32>
    %9 = arith.addf %5, %8 : vector<192x256xf32>
    %c0_10 = arith.constant 0 : index
    %c0_11 = arith.constant 0 : index
    %10 = vector.load %arg6[%c0_10, %c0_11] : memref<192x1xf32, #tpu.memory_space<vmem>>, vector<192x1xf32>
    %11 = vector.broadcast %10 : vector<192x1xf32> to vector<192x256xf32>
    %12 = arith.addf %9, %11 : vector<192x256xf32>
    %cst_12 = arith.constant 0.000000e+00 : f32
    %13 = vector.broadcast %cst_12 : f32 to vector<192x256xf32>
    %14 = arith.maximumf %12, %13 : vector<192x256xf32>
    %c0_13 = arith.constant 0 : index
    %c0_14 = arith.constant 0 : index
    %c0_15 = arith.constant 0 : index
    %15 = vector.load %arg7[%c0_13, %c0_14, %c0_15] : memref<1x192x256xf32, #tpu.memory_space<vmem>>, vector<1x192x256xf32>
    %16 = vector.shape_cast %15 : vector<1x192x256xf32> to vector<192x256xf32>
    %17 = vector.shape_cast %14 : vector<192x256xf32> to vector<1x192x256xf32>
    tpu.vector_store %arg7[%c0_13, %c0_14, %c0_15], %17 {strides = array<i32>} : memref<1x192x256xf32, #tpu.memory_space<vmem>>, vector<1x192x256xf32>,
    return
  }
  func.func @transform_0(%arg0: i32, %arg1: i32) -> (i32, i32, i32) {
    %c0_i32 = arith.constant 0 : i32
    %c0_i32_0 = arith.constant 0 : i32
    return %arg0, %c0_i32, %arg1 : i32, i32, i32
  }
  func.func @transform_1(%arg0: i32, %arg1: i32) -> (i32, i32, i32) {
    %c0_i32 = arith.constant 0 : i32
    %c0_i32_0 = arith.constant 0 : i32
    return %arg0, %c0_i32, %arg1 : i32, i32, i32
  }
  func.func @transform_2(%arg0: i32, %arg1: i32) -> (i32, i32) {
    %c0_i32 = arith.constant 0 : i32
    %c0_i32_0 = arith.constant 0 : i32
    %c0_i32_1 = arith.constant 0 : i32
    return %c0_i32, %c0_i32_0 : i32, i32
  }
  func.func @transform_3(%arg0: i32, %arg1: i32) -> (i32, i32) {
    %c0_i32 = arith.constant 0 : i32
    %c0_i32_0 = arith.constant 0 : i32
    %c0_i32_1 = arith.constant 0 : i32
    return %c0_i32, %c0_i32_0 : i32, i32
  }
  func.func @transform_4(%arg0: i32, %arg1: i32) -> (i32, i32) {
    %c0_i32 = arith.constant 0 : i32
    %c0_i32_0 = arith.constant 0 : i32
    %c0_i32_1 = arith.constant 0 : i32
    return %c0_i32, %c0_i32_0 : i32, i32
  }
  func.func @transform_5(%arg0: i32, %arg1: i32) -> (i32, i32, i32) {
    %c0_i32 = arith.constant 0 : i32
    %c0_i32_0 = arith.constant 0 : i32
    return %arg0, %c0_i32, %arg1 : i32, i32, i32
  }
}

</mosaic_0001>

<llo_original>
// kernel: _forward_impl.1
$region0: #{_forward_impl.1}
  #allocation0 [shape = 'u32[]', space=smem, size = 0x4, offset = 0x4, fixed_abs, tag = 'smem constant byte address 0x4 - core index']
  #allocation1 [shape = 'u32[144,128]{1,0:T(1,128)}', space=vmem, size = 0x12000, scoped, tag = 'internal scratch']
  %s0 = inlined_call_operand.vmem [shape: f32[2,192,256], index: 0, kind: input, shape index: {}]
  %s1 = inlined_call_operand.vmem [shape: f32[2,192,256], index: 1, kind: input, shape index: {}]
  %s2 = inlined_call_operand.vmem [shape: f32[192,192], index: 2, kind: input, shape index: {}]
  %s3 = inlined_call_operand.vmem [shape: f32[192,192], index: 3, kind: input, shape index: {}]
  %s4 = inlined_call_operand.vmem [shape: f32[192,1], index: 4, kind: input, shape index: {}]
  %s5 = inlined_call_operand.vmem [shape: f32[2,192,256], index: 5, kind: output, shape index: {}]
  %s6 = sld [smem:[#allocation0]]
  $region53: #{_forward_impl.1} parent=0
    _
  %s8 = ssub.s32 1, %s6
  %s9 = scalar_select 0, %s8, %s6
  loop: start=0, step=1, limit=4
  $region2: #{_forward_impl.1} parent=0 // loop_pre_header
    _
  $region3: #{_forward_impl.1} parent=0 // loop_header
    %s11 = sphi 0, %s15
    %p12 = scmp.ge.s32.totalorder %s11, 4
    %s18 = sphi 0, %s30
    %s19 = sphi 0, %s26
    %s20 = sphi 0, %s18
    %s21 = sphi 0, %s19
    %s22 = sphi 0, %s20
    %s23 = sphi 0, %s21
    %s35 = sphi 0, %s37
    %s38 = sphi 0, %s35
    %s39 = sphi 0, %s38
    %s55 = sphi 0, %s39
    %s63 = sphi 0, %s65
    %s66 = sphi 0, %s63
    %s67 = sphi 0, %s66
    %s83 = sphi 0, %s67
    %s87 = sphi 0, %s87
    %s89 = sphi 0, %s87
    %s90 = sphi 0, %s89
    %s104 = sphi 0, %s90
    %s108 = sphi 0, %s108
    %s110 = sphi 0, %s108
    %s111 = sphi 0, %s110
    %s125 = sphi 0, %s111
    %s129 = sphi 0, %s129
    %s131 = sphi 0, %s129
    %s132 = sphi 0, %s131
    %s146 = sphi 0, %s132
    %s154 = sphi 0, %s156
    %s157 = sphi 0, %s154
    %s158 = sphi 0, %s157
    %s174 = sphi 0, %s158
  $region4: #{_forward_impl.1} parent=0 // loop_header_branch
    %14 = sbr.rel (%p12) target = $region8
  $region5: #{_forward_impl.1} parent=0 // loop_body
    %s16 = ssub.s32 %s11, 1
    %s17 = ssub.s32 %s11, 2
    %s24 = sadd.s32 1, %s19
    %p25 = scmp.ge.s32.totalorder %s24, 1
    %s26 = scalar_select %p25, 0, %s24
    %s27 = sadd.s32 1, %s18
    %s28 = scalar_select %p25, %s27, %s18
    %p29 = scmp.ge.s32.totalorder %s28, 2
    %s30 = scalar_select %p29, 0, %s28
    %s31 = ssub.s32 %s18, %s30
    %s32 = ssub.s32 %s19, %s26
    %s33 = sor.u32 %s31, %s32
    %p34 = scmp.eq.s32.totalorder %s33, 0
    %s36 = sadd.s32 %s35, 1
    %s37 = scalar_select %p34, %s35, %s36
    %p40 = pneg %p34
    %p41 = scmp.eq.s32.totalorder %s11, 1
    %p42 = por %p40, %p41
    %p43 = scmp.ne.s32.totalorder %s35, %s38
    %p44 = scmp.eq.s32.totalorder %s11, 0
    %p45 = por %p43, %p44
    %p46 = scmp.ne.s32.totalorder %s35, %s38
    %p47 = scmp.eq.s32.totalorder %s16, 1
    %p48 = por %p46, %p47
    %p49 = scmp.ne.s32.totalorder %s38, %s39
    %p50 = scmp.eq.s32.totalorder %s16, 0
    %p51 = por %p49, %p50
    %p52 = scmp.ne.s32.totalorder %s38, %s39
    %p53 = scmp.eq.s32.totalorder %s17, 1
    %p54 = por %p52, %p53
    %p56 = scmp.ne.s32.totalorder %s39, %s55
    %p57 = scmp.eq.s32.totalorder %s17, 0
    %p58 = por %p56, %p57
    %s59 = ssub.s32 %s18, %s30
    %s60 = ssub.s32 %s19, %s26
    %s61 = sor.u32 %s59, %s60
    %p62 = scmp.eq.s32.totalorder %s61, 0
    %s64 = sadd.s32 %s63, 1
    %s65 = scalar_select %p62, %s63, %s64
    %p68 = pneg %p62
    %p69 = scmp.eq.s32.totalorder %s11, 1
    %p70 = por %p68, %p69
    %p71 = scmp.ne.s32.totalorder %s63, %s66
    %p72 = scmp.eq.s32.totalorder %s11, 0
    %p73 = por %p71, %p72
    %p74 = scmp.ne.s32.totalorder %s63, %s66
    %p75 = scmp.eq.s32.totalorder %s16, 1
    %p76 = por %p74, %p75
    %p77 = scmp.ne.s32.totalorder %s66, %s67
    %p78 = scmp.eq.s32.totalorder %s16, 0
    %p79 = por %p77, %p78
    %p80 = scmp.ne.s32.totalorder %s66, %s67
    %p81 = scmp.eq.s32.totalorder %s17, 1
    %p82 = por %p80, %p81
    %p84 = scmp.ne.s32.totalorder %s67, %s83
    %p85 = scmp.eq.s32.totalorder %s17, 0
    %p86 = por %p84, %p85
    %s88 = sadd.s32 %s87, 1
    %p91 = scmp.eq.s32.totalorder %s11, 1
    %p92 = scmp.ne.s32.totalorder %s87, %s89
    %p93 = scmp.eq.s32.totalorder %s11, 0
    %p94 = por %p92, %p93
    %p95 = scmp.ne.s32.totalorder %s87, %s89
    %p96 = scmp.eq.s32.totalorder %s16, 1
    %p97 = por %p95, %p96
    %p98 = scmp.ne.s32.totalorder %s89, %s90
    %p99 = scmp.eq.s32.totalorder %s16, 0
    %p100 = por %p98, %p99
    %p101 = scmp.ne.s32.totalorder %s89, %s90
    %p102 = scmp.eq.s32.totalorder %s17, 1
    %p103 = por %p101, %p102
    %p105 = scmp.ne.s32.totalorder %s90, %s104
    %p106 = scmp.eq.s32.totalorder %s17, 0
    %p107 = por %p105, %p106
    %s109 = sadd.s32 %s108, 1
    %p112 = scmp.eq.s32.totalorder %s11, 1
    %p113 = scmp.ne.s32.totalorder %s108, %s110
    %p114 = scmp.eq.s32.totalorder %s11, 0
    %p115 = por %p113, %p114
    %p116 = scmp.ne.s32.totalorder %s108, %s110
    %p117 = scmp.eq.s32.totalorder %s16, 1
    %p118 = por %p116, %p117
    %p119 = scmp.ne.s32.totalorder %s110, %s111
    %p120 = scmp.eq.s32.totalorder %s16, 0
    %p121 = por %p119, %p120
    %p122 = scmp.ne.s32.totalorder %s110, %s111
    %p123 = scmp.eq.s32.totalorder %s17, 1
    %p124 = por %p122, %p123
    %p126 = scmp.ne.s32.totalorder %s111, %s125
    %p127 = scmp.eq.s32.totalorder %s17, 0
    %p128 = por %p126, %p127
    %s130 = sadd.s32 %s129, 1
    %p133 = scmp.eq.s32.totalorder %s11, 1
    %p134 = scmp.ne.s32.totalorder %s129, %s131
    %p135 = scmp.eq.s32.totalorder %s11, 0
    %p136 = por %p134, %p135
    %p137 = scmp.ne.s32.totalorder %s129, %s131
    %p138 = scmp.eq.s32.totalorder %s16, 1
    %p139 = por %p137, %p138
    %p140 = scmp.ne.s32.totalorder %s131, %s132
    %p141 = scmp.eq.s32.totalorder %s16, 0
    %p142 = por %p140, %p141
    %p143 = scmp.ne.s32.totalorder %s131, %s132
    %p144 = scmp.eq.s32.totalorder %s17, 1
    %p145 = por %p143, %p144
    %p147 = scmp.ne.s32.totalorder %s132, %s146
    %p148 = scmp.eq.s32.totalorder %s17, 0
    %p149 = por %p147, %p148
    %s150 = ssub.s32 %s18, %s30
    %s151 = ssub.s32 %s19, %s26
    %s152 = sor.u32 %s150, %s151
    %p153 = scmp.eq.s32.totalorder %s152, 0
    %s155 = sadd.s32 %s154, 1
    %s156 = scalar_select %p153, %s154, %s155
    %p159 = pneg %p153
    %p160 = scmp.eq.s32.totalorder %s11, 1
    %p161 = por %p159, %p160
    %p162 = scmp.ne.s32.totalorder %s154, %s157
    %p163 = scmp.eq.s32.totalorder %s11, 0
    %p164 = por %p162, %p163
    %p165 = scmp.ne.s32.totalorder %s154, %s157
    %p166 = scmp.eq.s32.totalorder %s16, 1
    %p167 = por %p165, %p166
    %p168 = scmp.ne.s32.totalorder %s157, %s158
    %p169 = scmp.eq.s32.totalorder %s16, 0
    %p170 = por %p168, %p169
    %p171 = scmp.ne.s32.totalorder %s157, %s158
    %p172 = scmp.eq.s32.totalorder %s17, 1
    %p173 = por %p171, %p172
    %p175 = scmp.ne.s32.totalorder %s158, %s174
    %p176 = scmp.eq.s32.totalorder %s17, 0
    %p177 = por %p175, %p176
    %p178 = scmp.le.s32.totalorder 1, %s11
    %p179 = scmp.lt.s32.totalorder %s11, 3
    %p180 = pnand %p178, %p179
    %p181 = pneg %p180
    // Predicated region
    $region9: #{_forward_impl.1} parent=5 // pred_check
      _
    $region10: #{_forward_impl.1} parent=5 // pred_check_branch
      %183 = sbr.rel (%p180) target = $region12
    $region11: #{_forward_impl.1} parent=5 // pred_region
      %s184 = ssub.s32 %s11, 1
      // Predicated region
      $region13: #{_forward_impl.1} parent=11 // pred_check
        %p185 = pneg %p100
      $region14: #{_forward_impl.1} parent=11 // pred_check_branch
        %187 = sbr.rel (%p185) target = $region16
      $region15: #{_forward_impl.1} parent=11 // pred_region
        _
      $region16: #{_forward_impl.1} parent=11 // pred_fallthru
        _
      // Predicated region
      $region17: #{_forward_impl.1} parent=11 // pred_check
        %p188 = pneg %p121
      $region18: #{_forward_impl.1} parent=11 // pred_check_branch
        %190 = sbr.rel (%p188) target = $region20
      $region19: #{_forward_impl.1} parent=11 // pred_region
        _
      $region20: #{_forward_impl.1} parent=11 // pred_fallthru
        _
      // Predicated region
      $region21: #{_forward_impl.1} parent=11 // pred_check
        %p191 = pneg %p142
      $region22: #{_forward_impl.1} parent=11 // pred_check_branch
        %193 = sbr.rel (%p191) target = $region24
      $region23: #{_forward_impl.1} parent=11 // pred_region
        _
      $region24: #{_forward_impl.1} parent=11 // pred_fallthru
        _
    $region12: #{_forward_impl.1} parent=5 // pred_fallthru
      _
    %p194 = scmp.lt.s32.totalorder %s11, 2
    // Predicated region
    $region25: #{_forward_impl.1} parent=5 // pred_check
      %p195 = pneg %p194
    $region26: #{_forward_impl.1} parent=5 // pred_check_branch
      %197 = sbr.rel (%p195) target = $region28
    $region27: #{_forward_impl.1} parent=5 // pred_region
      // Predicated region
      $region29: #{_forward_impl.1} parent=27 // pred_check
        %p198 = pneg %p45
      $region30: #{_forward_impl.1} parent=27 // pred_check_branch
        %200 = sbr.rel (%p198) target = $region32
      $region31: #{_forward_impl.1} parent=27 // pred_region
        %s201 = smul.u32 2, %s19
        %p202 = scmp.lt.s32.totalorder %s18, 1
        %s203 = scalar_select %p202, %s18, 1
        %p204 = scmp.lt.s32.totalorder %s201, 1
        %s205 = scalar_select %p204, %s201, 1
        %s206 = smul.addr %s203, 48
        %s207 = sadd.s32 %s205, %s206
        %s208 = smul.addr %s207, 8
        %s209 = scalar_lea.vmem %s0, %s208
        %s210 = smul.u32 2, %s19
      $region32: #{_forward_impl.1} parent=27 // pred_fallthru
        _
      // Predicated region
      $region33: #{_forward_impl.1} parent=27 // pred_check
        %p211 = pneg %p73
      $region34: #{_forward_impl.1} parent=27 // pred_check_branch
        %213 = sbr.rel (%p211) target = $region36
      $region35: #{_forward_impl.1} parent=27 // pred_region
        %s214 = smul.u32 2, %s19
        %p215 = scmp.lt.s32.totalorder %s18, 1
        %s216 = scalar_select %p215, %s18, 1
        %p217 = scmp.lt.s32.totalorder %s214, 1
        %s218 = scalar_select %p217, %s214, 1
        %s219 = smul.addr %s216, 48
        %s220 = sadd.s32 %s218, %s219
        %s221 = smul.addr %s220, 8
        %s222 = scalar_lea.vmem %s1, %s221
        %s223 = smul.u32 2, %s19
      $region36: #{_forward_impl.1} parent=27 // pred_fallthru
        _
    $region28: #{_forward_impl.1} parent=5 // pred_fallthru
      _
    %p224 = scmp.le.s32.totalorder 1, %s11
    %p225 = scmp.lt.s32.totalorder %s11, 3
    %p226 = pnand %p224, %p225
    %p227 = pneg %p226
    // Predicated region
    $region37: #{_forward_impl.1} parent=5 // pred_check
      _
    $region38: #{_forward_impl.1} parent=5 // pred_check_branch
      %229 = sbr.rel (%p226) target = $region40
    $region39: #{_forward_impl.1} parent=5 // pred_region
      %s230 = ssub.s32 %s11, 1
      %s231 = smul.u32 2, %s21
      %p232 = scmp.lt.s32.totalorder %s20, 1
      %s233 = scalar_select %p232, %s20, 1
      %p234 = scmp.lt.s32.totalorder %s231, 1
      %s235 = scalar_select %p234, %s231, 1
      %s236 = smul.addr %s233, 48
      %s237 = sadd.s32 %s235, %s236
      %s238 = smul.addr %s237, 8
      %s239 = scalar_lea.vmem %s0, %s238
      %p240 = pneg %p51
      %p241 = pneg %p48
      %s242 = smul.u32 2, %s21
      %p243 = scmp.lt.s32.totalorder %s20, 1
      %s244 = scalar_select %p243, %s20, 1
      %p245 = scmp.lt.s32.totalorder %s242, 1
      %s246 = scalar_select %p245, %s242, 1
      %s247 = smul.addr %s244, 48
      %s248 = sadd.s32 %s246, %s247
      %s249 = smul.addr %s248, 8
      %s250 = scalar_lea.vmem %s1, %s249
      %p251 = pneg %p79
      %p252 = pneg %p76
      %p253 = pneg %p100
      %p254 = pneg %p97
      %p255 = pneg %p121
      %p256 = pneg %p118
      %p257 = pneg %p142
      %p258 = pneg %p139
      %p259 = pneg %p170
      %p260 = pneg %p167
      %s261 = smul.u32 2, %s21
      %p262 = scmp.lt.s32.totalorder %s20, 1
      %s263 = scalar_select %p262, %s20, 1
      %p264 = scmp.lt.s32.totalorder %s261, 1
      %s265 = scalar_select %p264, %s261, 1
      %s266 = smul.addr %s263, 48
      %s267 = sadd.s32 %s265, %s266
      %s268 = smul.addr %s267, 8
      %s269 = scalar_lea.vmem %s5, %s268
      %s270 = smul.u32 2, %s21
      %p271 = scmp.lt.s32.totalorder %s20, 1
      %s272 = scalar_select %p271, %s20, 1
      %p273 = scmp.lt.s32.totalorder %s270, 1
      %s274 = scalar_select %p273, %s270, 1
      %s275 = smul.addr %s272, 48
      %s276 = sadd.s32 %s274, %s275
      %s277 = smul.addr %s276, 8
      %s278 = scalar_lea.vmem %s0, %s277
      %s279 = smul.u32 2, %s21
      %s280 = smul.u32 2, %s21
      %p281 = scmp.lt.s32.totalorder %s20, 1
      %s282 = scalar_select %p281, %s20, 1
      %p283 = scmp.lt.s32.totalorder %s280, 1
      %s284 = scalar_select %p283, %s280, 1
      %s285 = smul.addr %s282, 48
      %s286 = sadd.s32 %s284, %s285
      %s287 = smul.addr %s286, 8
      %s288 = scalar_lea.vmem %s1, %s287
      %s289 = smul.u32 2, %s21
      %s290 = smul.u32 2, %s21
      %p291 = scmp.lt.s32.totalorder %s20, 1
      %s292 = scalar_select %p291, %s20, 1
      %p293 = scmp.lt.s32.totalorder %s290, 1
      %s294 = scalar_select %p293, %s290, 1
      %s295 = smul.addr %s292, 48
      %s296 = sadd.s32 %s294, %s295
      %s297 = smul.addr %s296, 8
      %s298 = scalar_lea.vmem %s5, %s297
      %s299 = smul.u32 2, %s21
      %v300 = vld [vmem:[%s278] sm:$0xff]
      %v301 = vld [vmem:[%s278 + $0x8] sm:$0xff]
      %v302 = vld [vmem:[%s278 + $0x10] sm:$0xff]
      %v303 = vld [vmem:[%s278 + $0x18] sm:$0xff]
      %v304 = vld [vmem:[%s278 + $0x20] sm:$0xff]
      %v305 = vld [vmem:[%s278 + $0x28] sm:$0xff]
      %v306 = vld [vmem:[%s278 + $0x30] sm:$0xff]
      %v307 = vld [vmem:[%s278 + $0x38] sm:$0xff]
      %v308 = vld [vmem:[%s278 + $0x40] sm:$0xff]
      %v309 = vld [vmem:[%s278 + $0x48] sm:$0xff]
      %v310 = vld [vmem:[%s278 + $0x50] sm:$0xff]
      %v311 = vld [vmem:[%s278 + $0x58] sm:$0xff]
      %v312 = vld [vmem:[%s278 + $0x60] sm:$0xff]
      %v313 = vld [vmem:[%s278 + $0x68] sm:$0xff]
      %v314 = vld [vmem:[%s278 + $0x70] sm:$0xff]
      %v315 = vld [vmem:[%s278 + $0x78] sm:$0xff]
      %v316 = vld [vmem:[%s278 + $0x80] sm:$0xff]
      %v317 = vld [vmem:[%s278 + $0x88] sm:$0xff]
      %v318 = vld [vmem:[%s278 + $0x90] sm:$0xff]
      %v319 = vld [vmem:[%s278 + $0x98] sm:$0xff]
      %v320 = vld [vmem:[%s278 + $0xa0] sm:$0xff]
      %v321 = vld [vmem:[%s278 + $0xa8] sm:$0xff]
      %v322 = vld [vmem:[%s278 + $0xb0] sm:$0xff]
      %v323 = vld [vmem:[%s278 + $0xb8] sm:$0xff]
      %v324 = vld [vmem:[%s278 + $0xc0] sm:$0xff]
      %v325 = vld [vmem:[%s278 + $0xc8] sm:$0xff]
      %v326 = vld [vmem:[%s278 + $0xd0] sm:$0xff]
      %v327 = vld [vmem:[%s278 + $0xd8] sm:$0xff]
      %v328 = vld [vmem:[%s278 + $0xe0] sm:$0xff]
      %v329 = vld [vmem:[%s278 + $0xe8] sm:$0xff]
      %v330 = vld [vmem:[%s278 + $0xf0] sm:$0xff]
      %v331 = vld [vmem:[%s278 + $0xf8] sm:$0xff]
      %v332 = vld [vmem:[%s278 + $0x100] sm:$0xff]
      %v333 = vld [vmem:[%s278 + $0x108] sm:$0xff]
      %v334 = vld [vmem:[%s278 + $0x110] sm:$0xff]
      %v335 = vld [vmem:[%s278 + $0x118] sm:$0xff]
      %v336 = vld [vmem:[%s278 + $0x120] sm:$0xff]
      %v337 = vld [vmem:[%s278 + $0x128] sm:$0xff]
      %v338 = vld [vmem:[%s278 + $0x130] sm:$0xff]
      %v339 = vld [vmem:[%s278 + $0x138] sm:$0xff]
      %v340 = vld [vmem:[%s278 + $0x140] sm:$0xff]
      %v341 = vld [vmem:[%s278 + $0x148] sm:$0xff]
      %v342 = vld [vmem:[%s278 + $0x150] sm:$0xff]
      %v343 = vld [vmem:[%s278 + $0x158] sm:$0xff]
      %v344 = vld [vmem:[%s278 + $0x160] sm:$0xff]
      %v345 = vld [vmem:[%s278 + $0x168] sm:$0xff]
      %v346 = vld [vmem:[%s278 + $0x170] sm:$0xff]
      %v347 = vld [vmem:[%s278 + $0x178] sm:$0xff]
      %v348 = vld [vmem:[%s288] sm:$0xff]
      %v349 = vld [vmem:[%s288 + $0x8] sm:$0xff]
      %v350 = vld [vmem:[%s288 + $0x10] sm:$0xff]
      %v351 = vld [vmem:[%s288 + $0x18] sm:$0xff]
      %v352 = vld [vmem:[%s288 + $0x20] sm:$0xff]
      %v353 = vld [vmem:[%s288 + $0x28] sm:$0xff]
      %v354 = vld [vmem:[%s288 + $0x30] sm:$0xff]
      %v355 = vld [vmem:[%s288 + $0x38] sm:$0xff]
      %v356 = vld [vmem:[%s288 + $0x40] sm:$0xff]
      %v357 = vld [vmem:[%s288 + $0x48] sm:$0xff]
      %v358 = vld [vmem:[%s288 + $0x50] sm:$0xff]
      %v359 = vld [vmem:[%s288 + $0x58] sm:$0xff]
      %v360 = vld [vmem:[%s288 + $0x60] sm:$0xff]
      %v361 = vld [vmem:[%s288 + $0x68] sm:$0xff]
      %v362 = vld [vmem:[%s288 + $0x70] sm:$0xff]
      %v363 = vld [vmem:[%s288 + $0x78] sm:$0xff]
      %v364 = vld [vmem:[%s288 + $0x80] sm:$0xff]
      %v365 = vld [vmem:[%s288 + $0x88] sm:$0xff]
      %v366 = vld [vmem:[%s288 + $0x90] sm:$0xff]
      %v367 = vld [vmem:[%s288 + $0x98] sm:$0xff]
      %v368 = vld [vmem:[%s288 + $0xa0] sm:$0xff]
      %v369 = vld [vmem:[%s288 + $0xa8] sm:$0xff]
      %v370 = vld [vmem:[%s288 + $0xb0] sm:$0xff]
      %v371 = vld [vmem:[%s288 + $0xb8] sm:$0xff]
      %v372 = vld [vmem:[%s288 + $0xc0] sm:$0xff]
      %v373 = vld [vmem:[%s288 + $0xc8] sm:$0xff]
      %v374 = vld [vmem:[%s288 + $0xd0] sm:$0xff]
      %v375 = vld [vmem:[%s288 + $0xd8] sm:$0xff]
      %v376 = vld [vmem:[%s288 + $0xe0] sm:$0xff]
      %v377 = vld [vmem:[%s288 + $0xe8] sm:$0xff]
      %v378 = vld [vmem:[%s288 + $0xf0] sm:$0xff]
      %v379 = vld [vmem:[%s288 + $0xf8] sm:$0xff]
      %v380 = vld [vmem:[%s288 + $0x100] sm:$0xff]
      %v381 = vld [vmem:[%s288 + $0x108] sm:$0xff]
      %v382 = vld [vmem:[%s288 + $0x110] sm:$0xff]
      %v383 = vld [vmem:[%s288 + $0x118] sm:$0xff]
      %v384 = vld [vmem:[%s288 + $0x120] sm:$0xff]
      %v385 = vld [vmem:[%s288 + $0x128] sm:$0xff]
      %v386 = vld [vmem:[%s288 + $0x130] sm:$0xff]
      %v387 = vld [vmem:[%s288 + $0x138] sm:$0xff]
      %v388 = vld [vmem:[%s288 + $0x140] sm:$0xff]
      %v389 = vld [vmem:[%s288 + $0x148] sm:$0xff]
      %v390 = vld [vmem:[%s288 + $0x150] sm:$0xff]
      %v391 = vld [vmem:[%s288 + $0x158] sm:$0xff]
      %v392 = vld [vmem:[%s288 + $0x160] sm:$0xff]
      %v393 = vld [vmem:[%s288 + $0x168] sm:$0xff]
      %v394 = vld [vmem:[%s288 + $0x170] sm:$0xff]
      %v395 = vld [vmem:[%s288 + $0x178] sm:$0xff]
      %v396 = vld [vmem:[%s2] sm:$0xff]
      %v397 = vld [vmem:[%s2 + $0x8] sm:$0xff]
      %v398 = vld [vmem:[%s2 + $0x10] sm:$0xff]
      %v399 = vld [vmem:[%s2 + $0x18] sm:$0xff]
      %v400 = vld [vmem:[%s2 + $0x20] sm:$0xff]
      %v401 = vld [vmem:[%s2 + $0x28] sm:$0xff]
      %v402 = vld [vmem:[%s2 + $0x30] sm:$0xff]
      %v403 = vld [vmem:[%s2 + $0x38] sm:$0xff]
      %v404 = vld [vmem:[%s2 + $0x40] sm:$0xff]
      %v405 = vld [vmem:[%s2 + $0x48] sm:$0xff]
      %v406 = vld [vmem:[%s2 + $0x50] sm:$0xff]
      %v407 = vld [vmem:[%s2 + $0x58] sm:$0xff]
      %v408 = vld [vmem:[%s2 + $0x60] sm:$0xff]
      %v409 = vld [vmem:[%s2 + $0x68] sm:$0xff]
      %v410 = vld [vmem:[%s2 + $0x70] sm:$0xff]
      %v411 = vld [vmem:[%s2 + $0x78] sm:$0xff]
      %v412 = vld [vmem:[%s2 + $0x80] sm:$0xff]
      %v413 = vld [vmem:[%s2 + $0x88] sm:$0xff]
      %v414 = vld [vmem:[%s2 + $0x90] sm:$0xff]
      %v415 = vld [vmem:[%s2 + $0x98] sm:$0xff]
      %v416 = vld [vmem:[%s2 + $0xa0] sm:$0xff]
      %v417 = vld [vmem:[%s2 + $0xa8] sm:$0xff]
      %v418 = vld [vmem:[%s2 + $0xb0] sm:$0xff]
      %v419 = vld [vmem:[%s2 + $0xb8] sm:$0xff]
      %v420 = vld [vmem:[%s2 + $0xc0] sm:$0xff]
      %v421 = vld [vmem:[%s2 + $0xc8] sm:$0xff]
      %v422 = vld [vmem:[%s2 + $0xd0] sm:$0xff]
      %v423 = vld [vmem:[%s2 + $0xd8] sm:$0xff]
      %v424 = vld [vmem:[%s2 + $0xe0] sm:$0xff]
      %v425 = vld [vmem:[%s2 + $0xe8] sm:$0xff]
      %v426 = vld [vmem:[%s2 + $0xf0] sm:$0xff]
      %v427 = vld [vmem:[%s2 + $0xf8] sm:$0xff]
      %v428 = vld [vmem:[%s2 + $0x100] sm:$0xff]
      %v429 = vld [vmem:[%s2 + $0x108] sm:$0xff]
      %v430 = vld [vmem:[%s2 + $0x110] sm:$0xff]
      %v431 = vld [vmem:[%s2 + $0x118] sm:$0xff]
      %v432 = vld [vmem:[%s2 + $0x120] sm:$0xff]
      %v433 = vld [vmem:[%s2 + $0x128] sm:$0xff]
      %v434 = vld [vmem:[%s2 + $0x130] sm:$0xff]
      %v435 = vld [vmem:[%s2 + $0x138] sm:$0xff]
      %v436 = vld [vmem:[%s2 + $0x140] sm:$0xff]
      %v437 = vld [vmem:[%s2 + $0x148] sm:$0xff]
      %v438 = vld [vmem:[%s2 + $0x150] sm:$0xff]
      %v439 = vld [vmem:[%s2 + $0x158] sm:$0xff]
      %v440 = vld [vmem:[%s2 + $0x160] sm:$0xff]
      %v441 = vld [vmem:[%s2 + $0x168] sm:$0xff]
      %v442 = vld [vmem:[%s2 + $0x170] sm:$0xff]
      %v443 = vld [vmem:[%s2 + $0x178] sm:$0xff]
      %v444 = vld [vmem:[%s3] sm:$0xff]
      %v445 = vld [vmem:[%s3 + $0x8] sm:$0xff]
      %v446 = vld [vmem:[%s3 + $0x10] sm:$0xff]
      %v447 = vld [vmem:[%s3 + $0x18] sm:$0xff]
      %v448 = vld [vmem:[%s3 + $0x20] sm:$0xff]
      %v449 = vld [vmem:[%s3 + $0x28] sm:$0xff]
      %v450 = vld [vmem:[%s3 + $0x30] sm:$0xff]
      %v451 = vld [vmem:[%s3 + $0x38] sm:$0xff]
      %v452 = vld [vmem:[%s3 + $0x40] sm:$0xff]
      %v453 = vld [vmem:[%s3 + $0x48] sm:$0xff]
      %v454 = vld [vmem:[%s3 + $0x50] sm:$0xff]
      %v455 = vld [vmem:[%s3 + $0x58] sm:$0xff]
      %v456 = vld [vmem:[%s3 + $0x60] sm:$0xff]
      %v457 = vld [vmem:[%s3 + $0x68] sm:$0xff]
      %v458 = vld [vmem:[%s3 + $0x70] sm:$0xff]
      %v459 = vld [vmem:[%s3 + $0x78] sm:$0xff]
      %v460 = vld [vmem:[%s3 + $0x80] sm:$0xff]
      %v461 = vld [vmem:[%s3 + $0x88] sm:$0xff]
      %v462 = vld [vmem:[%s3 + $0x90] sm:$0xff]
      %v463 = vld [vmem:[%s3 + $0x98] sm:$0xff]
      %v464 = vld [vmem:[%s3 + $0xa0] sm:$0xff]
      %v465 = vld [vmem:[%s3 + $0xa8] sm:$0xff]
      %v466 = vld [vmem:[%s3 + $0xb0] sm:$0xff]
      %v467 = vld [vmem:[%s3 + $0xb8] sm:$0xff]
      %v468 = vld [vmem:[%s3 + $0xc0] sm:$0xff]
      %v469 = vld [vmem:[%s3 + $0xc8] sm:$0xff]
      %v470 = vld [vmem:[%s3 + $0xd0] sm:$0xff]
      %v471 = vld [vmem:[%s3 + $0xd8] sm:$0xff]
      %v472 = vld [vmem:[%s3 + $0xe0] sm:$0xff]
      %v473 = vld [vmem:[%s3 + $0xe8] sm:$0xff]
      %v474 = vld [vmem:[%s3 + $0xf0] sm:$0xff]
      %v475 = vld [vmem:[%s3 + $0xf8] sm:$0xff]
      %v476 = vld [vmem:[%s3 + $0x100] sm:$0xff]
      %v477 = vld [vmem:[%s3 + $0x108] sm:$0xff]
      %v478 = vld [vmem:[%s3 + $0x110] sm:$0xff]
      %v479 = vld [vmem:[%s3 + $0x118] sm:$0xff]
      %v480 = vld [vmem:[%s3 + $0x120] sm:$0xff]
      %v481 = vld [vmem:[%s3 + $0x128] sm:$0xff]
      %v482 = vld [vmem:[%s3 + $0x130] sm:$0xff]
      %v483 = vld [vmem:[%s3 + $0x138] sm:$0xff]
      %v484 = vld [vmem:[%s3 + $0x140] sm:$0xff]
      %v485 = vld [vmem:[%s3 + $0x148] sm:$0xff]
      %v486 = vld [vmem:[%s3 + $0x150] sm:$0xff]
      %v487 = vld [vmem:[%s3 + $0x158] sm:$0xff]
      %v488 = vld [vmem:[%s3 + $0x160] sm:$0xff]
      %v489 = vld [vmem:[%s3 + $0x168] sm:$0xff]
      %v490 = vld [vmem:[%s3 + $0x170] sm:$0xff]
      %v491 = vld [vmem:[%s3 + $0x178] sm:$0xff]
      %v492 = vmul.f32 %v300, %v348
      %v493 = vmul.f32 %v301, %v349
      %v494 = vmul.f32 %v302, %v350
      %v495 = vmul.f32 %v303, %v351
      %v496 = vmul.f32 %v304, %v352
      %v497 = vmul.f32 %v305, %v353
      %v498 = vmul.f32 %v306, %v354
      %v499 = vmul.f32 %v307, %v355
      %v500 = vmul.f32 %v308, %v356
      %v501 = vmul.f32 %v309, %v357
      %v502 = vmul.f32 %v310, %v358
      %v503 = vmul.f32 %v311, %v359
      %v504 = vmul.f32 %v312, %v360
      %v505 = vmul.f32 %v313, %v361
      %v506 = vmul.f32 %v314, %v362
      %v507 = vmul.f32 %v315, %v363
      %v508 = vmul.f32 %v316, %v364
      %v509 = vmul.f32 %v317, %v365
      %v510 = vmul.f32 %v318, %v366
      %v511 = vmul.f32 %v319, %v367
      %v512 = vmul.f32 %v320, %v368
      %v513 = vmul.f32 %v321, %v369
      %v514 = vmul.f32 %v322, %v370
      %v515 = vmul.f32 %v323, %v371
      %v516 = vmul.f32 %v324, %v372
      %v517 = vmul.f32 %v325, %v373
      %v518 = vmul.f32 %v326, %v374
      %v519 = vmul.f32 %v327, %v375
      %v520 = vmul.f32 %v328, %v376
      %v521 = vmul.f32 %v329, %v377
      %v522 = vmul.f32 %v330, %v378
      %v523 = vmul.f32 %v331, %v379
      %v524 = vmul.f32 %v332, %v380
      %v525 = vmul.f32 %v333, %v381
      %v526 = vmul.f32 %v334, %v382
      %v527 = vmul.f32 %v335, %v383
      %v528 = vmul.f32 %v336, %v384
      %v529 = vmul.f32 %v337, %v385
      %v530 = vmul.f32 %v338, %v386
      %v531 = vmul.f32 %v339, %v387
      %v532 = vmul.f32 %v340, %v388
      %v533 = vmul.f32 %v341, %v389
      %v534 = vmul.f32 %v342, %v390
      %v535 = vmul.f32 %v343, %v391
      %v536 = vmul.f32 %v344, %v392
      %v537 = vmul.f32 %v345, %v393
      %v538 = vmul.f32 %v346, %v394
      %v539 = vmul.f32 %v347, %v395
      %vm540 = vcmask 523264
      %v542 = vsel %vm540, %v445, 0
      %v545 = vsel %vm540, %v447, 0
      %v548 = vsel %vm540, %v449, 0
      %v551 = vsel %vm540, %v451, 0
      %v554 = vsel %vm540, %v453, 0
      %v557 = vsel %vm540, %v455, 0
      %v560 = vsel %vm540, %v457, 0
      %v563 = vsel %vm540, %v459, 0
      %v566 = vsel %vm540, %v461, 0
      %v569 = vsel %vm540, %v463, 0
      %v572 = vsel %vm540, %v465, 0
      %v575 = vsel %vm540, %v467, 0
      %v578 = vsel %vm540, %v469, 0
      %v581 = vsel %vm540, %v471, 0
      %v584 = vsel %vm540, %v473, 0
      %v587 = vsel %vm540, %v475, 0
      %v590 = vsel %vm540, %v477, 0
      %v593 = vsel %vm540, %v479, 0
      %v596 = vsel %vm540, %v481, 0
      %v599 = vsel %vm540, %v483, 0
      %v602 = vsel %vm540, %v485, 0
      %v605 = vsel %vm540, %v487, 0
      %v608 = vsel %vm540, %v489, 0
      %v611 = vsel %vm540, %v491, 0
      %613 = vmatprep.subr.mxu0 %v523
      %614 = vmatpush1.msra.mxu0 %v522
      %615 = vmatprep.subr.mxu0 %v521
      %616 = vmatpush1.msra.mxu0 %v520
      %617 = vmatprep.subr.mxu0 %v519
      %618 = vmatpush1.msra.mxu0 %v518
      %619 = vmatprep.subr.mxu0 %v517
      %620 = vmatpush1.msra.mxu0 %v516
      %621 = vmatprep.subr.mxu0 %v515
      %622 = vmatpush1.msra.mxu0 %v514
      %623 = vmatprep.subr.mxu0 %v513
      %624 = vmatpush1.msra.mxu0 %v512
      %625 = vmatprep.subr.mxu0 %v511
      %626 = vmatpush1.msra.mxu0 %v510
      %627 = vmatprep.subr.mxu0 %v509
      %628 = vmatpush1.msra.mxu0 %v508
      %629 = vmatprep.subr.mxu0 %v507
      %630 = vmatpush1.msra.mxu0 %v506
      %631 = vmatprep.subr.mxu0 %v505
      %632 = vmatpush1.msra.mxu0 %v504
      %633 = vmatprep.subr.mxu0 %v503
      %634 = vmatpush1.msra.mxu0 %v502
      %635 = vmatprep.subr.mxu0 %v501
      %636 = vmatpush1.msra.mxu0 %v500
      %637 = vmatprep.subr.mxu0 %v499
      %638 = vmatpush1.msra.mxu0 %v498
      %639 = vmatprep.subr.mxu0 %v497
      %640 = vmatpush1.msra.mxu0 %v496
      %641 = vmatprep.subr.mxu0 %v495
      %642 = vmatpush1.msra.mxu0 %v494
      %643 = vmatprep.subr.mxu0 %v493
      %644 = vmatpush1.msra.mxu0 %v492
      %645 = vmatprep.subr.mxu0 0.0
      %646 = vmatpush2.msra.mxu0 0.0
      %647 = vmatprep.subr.mxu0 0.0
      %648 = vmatpush2.msra.mxu0 0.0
      %649 = vmatprep.subr.mxu0 0.0
      %650 = vmatpush2.msra.mxu0 0.0
      %651 = vmatprep.subr.mxu0 0.0
      %652 = vmatpush2.msra.mxu0 0.0
      %653 = vmatprep.subr.mxu0 0.0
      %654 = vmatpush2.msra.mxu0 0.0
      %655 = vmatprep.subr.mxu0 0.0
      %656 = vmatpush2.msra.mxu0 0.0
      %657 = vmatprep.subr.mxu0 0.0
      %658 = vmatpush2.msra.mxu0 0.0
      %659 = vmatprep.subr.mxu0 0.0
      %660 = vmatpush2.msra.mxu0 0.0
      %661 = vmatprep.subr.mxu0 %v539
      %662 = vmatpush2.msra.mxu0 %v538
      %663 = vmatprep.subr.mxu0 %v537
      %664 = vmatpush2.msra.mxu0 %v536
      %665 = vmatprep.subr.mxu0 %v535
      %666 = vmatpush2.msra.mxu0 %v534
      %667 = vmatprep.subr.mxu0 %v533
      %668 = vmatpush2.msra.mxu0 %v532
      %669 = vmatprep.subr.mxu0 %v531
      %670 = vmatpush2.msra.mxu0 %v530
      %671 = vmatprep.subr.mxu0 %v529
      %672 = vmatpush2.msra.mxu0 %v528
      %673 = vmatprep.subr.mxu0 %v527
      %674 = vmatpush2.msra.mxu0 %v526
      %675 = vmatprep.subr.mxu0 %v525
      %676 = vmatpush2.msra.mxu0 %v524
      %677 = vmatprep.mubr.f32.mxu0 %v542
      %678 = vmatmul.mubr.f32.gmra.mxu0 %v444
      %v679 = vpop.f32.mrf.mxu0
      %v680 = vadd.f32 0.0, %v679
      %v681 = vpop.f32.mrf.mxu0
      %v682 = vadd.f32 0.0, %v681
      %683 = vmatprep.mubr.f32.mxu0 %v545
      %684 = vmatmul.mubr.f32.gmra.mxu0 %v446
      %v685 = vpop.f32.mrf.mxu0
      %v686 = vadd.f32 0.0, %v685
      %v687 = vpop.f32.mrf.mxu0
      %v688 = vadd.f32 0.0, %v687
      %689 = vmatprep.mubr.f32.mxu0 %v548
      %690 = vmatmul.mubr.f32.gmra.mxu0 %v448
      %v691 = vpop.f32.mrf.mxu0
      %v692 = vadd.f32 0.0, %v691
      %v693 = vpop.f32.mrf.mxu0
      %v694 = vadd.f32 0.0, %v693
      %695 = vmatprep.mubr.f32.mxu0 %v551
      %696 = vmatmul.mubr.f32.gmra.mxu0 %v450
      %v697 = vpop.f32.mrf.mxu0
      %v698 = vadd.f32 0.0, %v697
      %v699 = vpop.f32.mrf.mxu0
      %v700 = vadd.f32 0.0, %v699
      %701 = vmatprep.mubr.f32.mxu0 %v554
      %702 = vmatmul.mubr.f32.gmra.mxu0 %v452
      %v703 = vpop.f32.mrf.mxu0
      %v704 = vadd.f32 0.0, %v703
      %v705 = vpop.f32.mrf.mxu0
      %v706 = vadd.f32 0.0, %v705
      %707 = vmatprep.mubr.f32.mxu0 %v557
      %708 = vmatmul.mubr.f32.gmra.mxu0 %v454
      %v709 = vpop.f32.mrf.mxu0
      %v710 = vadd.f32 0.0, %v709
      %v711 = vpop.f32.mrf.mxu0
      %v712 = vadd.f32 0.0, %v711
      %713 = vmatprep.mubr.f32.mxu0 %v560
      %714 = vmatmul.mubr.f32.gmra.mxu0 %v456
      %v715 = vpop.f32.mrf.mxu0
      %v716 = vadd.f32 0.0, %v715
      %v717 = vpop.f32.mrf.mxu0
      %v718 = vadd.f32 0.0, %v717
      %719 = vmatprep.mubr.f32.mxu0 %v563
      %720 = vmatmul.mubr.f32.gmra.mxu0 %v458
      %v721 = vpop.f32.mrf.mxu0
      %v722 = vadd.f32 0.0, %v721
      %v723 = vpop.f32.mrf.mxu0
      %v724 = vadd.f32 0.0, %v723
      %725 = vmatprep.mubr.f32.mxu0 %v566
      %726 = vmatmul.mubr.f32.gmra.mxu0 %v460
      %v727 = vpop.f32.mrf.mxu0
      %v728 = vadd.f32 0.0, %v727
      %v729 = vpop.f32.mrf.mxu0
      %v730 = vadd.f32 0.0, %v729
      %731 = vmatprep.mubr.f32.mxu0 %v569
      %732 = vmatmul.mubr.f32.gmra.mxu0 %v462
      %v733 = vpop.f32.mrf.mxu0
      %v734 = vadd.f32 0.0, %v733
      %v735 = vpop.f32.mrf.mxu0
      %v736 = vadd.f32 0.0, %v735
      %737 = vmatprep.mubr.f32.mxu0 %v572
      %738 = vmatmul.mubr.f32.gmra.mxu0 %v464
      %v739 = vpop.f32.mrf.mxu0
      %v740 = vadd.f32 0.0, %v739
      %v741 = vpop.f32.mrf.mxu0
      %v742 = vadd.f32 0.0, %v741
      %743 = vmatprep.mubr.f32.mxu0 %v575
      %744 = vmatmul.mubr.f32.gmra.mxu0 %v466
      %v745 = vpop.f32.mrf.mxu0
      %v746 = vadd.f32 0.0, %v745
      %v747 = vpop.f32.mrf.mxu0
      %v748 = vadd.f32 0.0, %v747
      %749 = vmatprep.mubr.f32.mxu0 %v578
      %750 = vmatmul.mubr.f32.gmra.mxu0 %v468
      %v751 = vpop.f32.mrf.mxu0
      %v752 = vadd.f32 0.0, %v751
      %v753 = vpop.f32.mrf.mxu0
      %v754 = vadd.f32 0.0, %v753
      %755 = vmatprep.mubr.f32.mxu0 %v581
      %756 = vmatmul.mubr.f32.gmra.mxu0 %v470
      %v757 = vpop.f32.mrf.mxu0
      %v758 = vadd.f32 0.0, %v757
      %v759 = vpop.f32.mrf.mxu0
      %v760 = vadd.f32 0.0, %v759
      %761 = vmatprep.mubr.f32.mxu0 %v584
      %762 = vmatmul.mubr.f32.gmra.mxu0 %v472
      %v763 = vpop.f32.mrf.mxu0
      %v764 = vadd.f32 0.0, %v763
      %v765 = vpop.f32.mrf.mxu0
      %v766 = vadd.f32 0.0, %v765
      %767 = vmatprep.mubr.f32.mxu0 %v587
      %768 = vmatmul.mubr.f32.gmra.mxu0 %v474
      %v769 = vpop.f32.mrf.mxu0
      %v770 = vadd.f32 0.0, %v769
      %v771 = vpop.f32.mrf.mxu0
      %v772 = vadd.f32 0.0, %v771
      %773 = vmatprep.mubr.f32.mxu0 %v590
      %774 = vmatmul.mubr.f32.gmra.mxu0 %v476
      %v775 = vpop.f32.mrf.mxu0
      %v776 = vadd.f32 0.0, %v775
      %v777 = vpop.f32.mrf.mxu0
      %v778 = vadd.f32 0.0, %v777
      %779 = vmatprep.mubr.f32.mxu0 %v593
      %780 = vmatmul.mubr.f32.gmra.mxu0 %v478
      %v781 = vpop.f32.mrf.mxu0
      %v782 = vadd.f32 0.0, %v781
      %v783 = vpop.f32.mrf.mxu0
      %v784 = vadd.f32 0.0, %v783
      %785 = vmatprep.mubr.f32.mxu0 %v596
      %786 = vmatmul.mubr.f32.gmra.mxu0 %v480
      %v787 = vpop.f32.mrf.mxu0
      %v788 = vadd.f32 0.0, %v787
      %v789 = vpop.f32.mrf.mxu0
      %v790 = vadd.f32 0.0, %v789
      %791 = vmatprep.mubr.f32.mxu0 %v599
      %792 = vmatmul.mubr.f32.gmra.mxu0 %v482
      %v793 = vpop.f32.mrf.mxu0
      %v794 = vadd.f32 0.0, %v793
      %v795 = vpop.f32.mrf.mxu0
      %v796 = vadd.f32 0.0, %v795
      %797 = vmatprep.mubr.f32.mxu0 %v602
      %798 = vmatmul.mubr.f32.gmra.mxu0 %v484
      %v799 = vpop.f32.mrf.mxu0
      %v800 = vadd.f32 0.0, %v799
      %v801 = vpop.f32.mrf.mxu0
      %v802 = vadd.f32 0.0, %v801
      %803 = vmatprep.mubr.f32.mxu0 %v605
      %804 = vmatmul.mubr.f32.gmra.mxu0 %v486
      %v805 = vpop.f32.mrf.mxu0
      %v806 = vadd.f32 0.0, %v805
      %v807 = vpop.f32.mrf.mxu0
      %v808 = vadd.f32 0.0, %v807
      %809 = vmatprep.mubr.f32.mxu0 %v608
      %810 = vmatmul.mubr.f32.gmra.mxu0 %v488
      %v811 = vpop.f32.mrf.mxu0
      %v812 = vadd.f32 0.0, %v811
      %v813 = vpop.f32.mrf.mxu0
      %v814 = vadd.f32 0.0, %v813
      %815 = vmatprep.mubr.f32.mxu0 %v611
      %816 = vmatmul.mubr.f32.gmra.mxu0 %v490
      %v817 = vpop.f32.mrf.mxu0
      %v818 = vadd.f32 0.0, %v817
      %v819 = vpop.f32.mrf.mxu0
      %v820 = vadd.f32 0.0, %v819
      %821 = vdwg.mxu0
      %v823 = vsel %vm540, %v397, 0
      %v826 = vsel %vm540, %v399, 0
      %v829 = vsel %vm540, %v401, 0
      %v832 = vsel %vm540, %v403, 0
      %v835 = vsel %vm540, %v405, 0
      %v838 = vsel %vm540, %v407, 0
      %v841 = vsel %vm540, %v409, 0
      %v844 = vsel %vm540, %v411, 0
      %v847 = vsel %vm540, %v413, 0
      %v850 = vsel %vm540, %v415, 0
      %v853 = vsel %vm540, %v417, 0
      %v856 = vsel %vm540, %v419, 0
      %v859 = vsel %vm540, %v421, 0
      %v862 = vsel %vm540, %v423, 0
      %v865 = vsel %vm540, %v425, 0
      %v868 = vsel %vm540, %v427, 0
      %v871 = vsel %vm540, %v429, 0
      %v874 = vsel %vm540, %v431, 0
      %v877 = vsel %vm540, %v433, 0
      %v880 = vsel %vm540, %v435, 0
      %v883 = vsel %vm540, %v437, 0
      %v886 = vsel %vm540, %v439, 0
      %v889 = vsel %vm540, %v441, 0
      %v892 = vsel %vm540, %v443, 0
      %894 = vmatprep.subr.mxu0 %v331
      %895 = vmatpush1.msra.mxu0 %v330
      %896 = vmatprep.subr.mxu0 %v329
      %897 = vmatpush1.msra.mxu0 %v328
      %898 = vmatprep.subr.mxu0 %v327
      %899 = vmatpush1.msra.mxu0 %v326
      %900 = vmatprep.subr.mxu0 %v325
      %901 = vmatpush1.msra.mxu0 %v324
      %902 = vmatprep.subr.mxu0 %v323
      %903 = vmatpush1.msra.mxu0 %v322
      %904 = vmatprep.subr.mxu0 %v321
      %905 = vmatpush1.msra.mxu0 %v320
      %906 = vmatprep.subr.mxu0 %v319
      %907 = vmatpush1.msra.mxu0 %v318
      %908 = vmatprep.subr.mxu0 %v317
      %909 = vmatpush1.msra.mxu0 %v316
      %910 = vmatprep.subr.mxu0 %v315
      %911 = vmatpush1.msra.mxu0 %v314
      %912 = vmatprep.subr.mxu0 %v313
      %913 = vmatpush1.msra.mxu0 %v312
      %914 = vmatprep.subr.mxu0 %v311
      %915 = vmatpush1.msra.mxu0 %v310
      %916 = vmatprep.subr.mxu0 %v309
      %917 = vmatpush1.msra.mxu0 %v308
      %918 = vmatprep.subr.mxu0 %v307
      %919 = vmatpush1.msra.mxu0 %v306
      %920 = vmatprep.subr.mxu0 %v305
      %921 = vmatpush1.msra.mxu0 %v304
      %922 = vmatprep.subr.mxu0 %v303
      %923 = vmatpush1.msra.mxu0 %v302
      %924 = vmatprep.subr.mxu0 %v301
      %925 = vmatpush1.msra.mxu0 %v300
      %926 = vmatprep.subr.mxu0 0.0
      %927 = vmatpush2.msra.mxu0 0.0
      %928 = vmatprep.subr.mxu0 0.0
      %929 = vmatpush2.msra.mxu0 0.0
      %930 = vmatprep.subr.mxu0 0.0
      %931 = vmatpush2.msra.mxu0 0.0
      %932 = vmatprep.subr.mxu0 0.0
      %933 = vmatpush2.msra.mxu0 0.0
      %934 = vmatprep.subr.mxu0 0.0
      %935 = vmatpush2.msra.mxu0 0.0
      %936 = vmatprep.subr.mxu0 0.0
      %937 = vmatpush2.msra.mxu0 0.0
      %938 = vmatprep.subr.mxu0 0.0
      %939 = vmatpush2.msra.mxu0 0.0
      %940 = vmatprep.subr.mxu0 0.0
      %941 = vmatpush2.msra.mxu0 0.0
      %942 = vmatprep.subr.mxu0 %v347
      %943 = vmatpush2.msra.mxu0 %v346
      %944 = vmatprep.subr.mxu0 %v345
      %945 = vmatpush2.msra.mxu0 %v344
      %946 = vmatprep.subr.mxu0 %v343
      %947 = vmatpush2.msra.mxu0 %v342
      %948 = vmatprep.subr.mxu0 %v341
      %949 = vmatpush2.msra.mxu0 %v340
      %950 = vmatprep.subr.mxu0 %v339
      %951 = vmatpush2.msra.mxu0 %v338
      %952 = vmatprep.subr.mxu0 %v337
      %953 = vmatpush2.msra.mxu0 %v336
      %954 = vmatprep.subr.mxu0 %v335
      %955 = vmatpush2.msra.mxu0 %v334
      %956 = vmatprep.subr.mxu0 %v333
      %957 = vmatpush2.msra.mxu0 %v332
      %958 = vmatprep.mubr.f32.mxu0 %v823
      %959 = vmatmul.mubr.f32.gmra.mxu0 %v396
      %v960 = vpop.f32.mrf.mxu0
      %v961 = vadd.f32 %v680, %v960
      %v962 = vpop.f32.mrf.mxu0
      %v963 = vadd.f32 %v682, %v962
      %964 = vmatprep.mubr.f32.mxu0 %v826
      %965 = vmatmul.mubr.f32.gmra.mxu0 %v398
      %v966 = vpop.f32.mrf.mxu0
      %v967 = vadd.f32 %v686, %v966
      %v968 = vpop.f32.mrf.mxu0
      %v969 = vadd.f32 %v688, %v968
      %970 = vmatprep.mubr.f32.mxu0 %v829
      %971 = vmatmul.mubr.f32.gmra.mxu0 %v400
      %v972 = vpop.f32.mrf.mxu0
      %v973 = vadd.f32 %v692, %v972
      %v974 = vpop.f32.mrf.mxu0
      %v975 = vadd.f32 %v694, %v974
      %976 = vmatprep.mubr.f32.mxu0 %v832
      %977 = vmatmul.mubr.f32.gmra.mxu0 %v402
      %v978 = vpop.f32.mrf.mxu0
      %v979 = vadd.f32 %v698, %v978
      %v980 = vpop.f32.mrf.mxu0
      %v981 = vadd.f32 %v700, %v980
      %982 = vmatprep.mubr.f32.mxu0 %v835
      %983 = vmatmul.mubr.f32.gmra.mxu0 %v404
      %v984 = vpop.f32.mrf.mxu0
      %v985 = vadd.f32 %v704, %v984
      %v986 = vpop.f32.mrf.mxu0
      %v987 = vadd.f32 %v706, %v986
      %988 = vmatprep.mubr.f32.mxu0 %v838
      %989 = vmatmul.mubr.f32.gmra.mxu0 %v406
      %v990 = vpop.f32.mrf.mxu0
      %v991 = vadd.f32 %v710, %v990
      %v992 = vpop.f32.mrf.mxu0
      %v993 = vadd.f32 %v712, %v992
      %994 = vmatprep.mubr.f32.mxu0 %v841
      %995 = vmatmul.mubr.f32.gmra.mxu0 %v408
      %v996 = vpop.f32.mrf.mxu0
      %v997 = vadd.f32 %v716, %v996
      %v998 = vpop.f32.mrf.mxu0
      %v999 = vadd.f32 %v718, %v998
      %1000 = vmatprep.mubr.f32.mxu0 %v844
      %1001 = vmatmul.mubr.f32.gmra.mxu0 %v410
      %v1002 = vpop.f32.mrf.mxu0
      %v1003 = vadd.f32 %v722, %v1002
      %v1004 = vpop.f32.mrf.mxu0
      %v1005 = vadd.f32 %v724, %v1004
      %1006 = vmatprep.mubr.f32.mxu0 %v847
      %1007 = vmatmul.mubr.f32.gmra.mxu0 %v412
      %v1008 = vpop.f32.mrf.mxu0
      %v1009 = vadd.f32 %v728, %v1008
      %v1010 = vpop.f32.mrf.mxu0
      %v1011 = vadd.f32 %v730, %v1010
      %1012 = vmatprep.mubr.f32.mxu0 %v850
      %1013 = vmatmul.mubr.f32.gmra.mxu0 %v414
      %v1014 = vpop.f32.mrf.mxu0
      %v1015 = vadd.f32 %v734, %v1014
      %v1016 = vpop.f32.mrf.mxu0
      %v1017 = vadd.f32 %v736, %v1016
      %1018 = vmatprep.mubr.f32.mxu0 %v853
      %1019 = vmatmul.mubr.f32.gmra.mxu0 %v416
      %v1020 = vpop.f32.mrf.mxu0
      %v1021 = vadd.f32 %v740, %v1020
      %v1022 = vpop.f32.mrf.mxu0
      %v1023 = vadd.f32 %v742, %v1022
      %1024 = vmatprep.mubr.f32.mxu0 %v856
      %1025 = vmatmul.mubr.f32.gmra.mxu0 %v418
      %v1026 = vpop.f32.mrf.mxu0
      %v1027 = vadd.f32 %v746, %v1026
      %v1028 = vpop.f32.mrf.mxu0
      %v1029 = vadd.f32 %v748, %v1028
      %1030 = vmatprep.mubr.f32.mxu0 %v859
      %1031 = vmatmul.mubr.f32.gmra.mxu0 %v420
      %v1032 = vpop.f32.mrf.mxu0
      %v1033 = vadd.f32 %v752, %v1032
      %v1034 = vpop.f32.mrf.mxu0
      %v1035 = vadd.f32 %v754, %v1034
      %1036 = vmatprep.mubr.f32.mxu0 %v862
      %1037 = vmatmul.mubr.f32.gmra.mxu0 %v422
      %v1038 = vpop.f32.mrf.mxu0
      %v1039 = vadd.f32 %v758, %v1038
      %v1040 = vpop.f32.mrf.mxu0
      %v1041 = vadd.f32 %v760, %v1040
      %1042 = vmatprep.mubr.f32.mxu0 %v865
      %1043 = vmatmul.mubr.f32.gmra.mxu0 %v424
      %v1044 = vpop.f32.mrf.mxu0
      %v1045 = vadd.f32 %v764, %v1044
      %v1046 = vpop.f32.mrf.mxu0
      %v1047 = vadd.f32 %v766, %v1046
      %1048 = vmatprep.mubr.f32.mxu0 %v868
      %1049 = vmatmul.mubr.f32.gmra.mxu0 %v426
      %v1050 = vpop.f32.mrf.mxu0
      %v1051 = vadd.f32 %v770, %v1050
      %v1052 = vpop.f32.mrf.mxu0
      %v1053 = vadd.f32 %v772, %v1052
      %1054 = vmatprep.mubr.f32.mxu0 %v871
      %1055 = vmatmul.mubr.f32.gmra.mxu0 %v428
      %v1056 = vpop.f32.mrf.mxu0
      %v1057 = vadd.f32 %v776, %v1056
      %v1058 = vpop.f32.mrf.mxu0
      %v1059 = vadd.f32 %v778, %v1058
      %1060 = vmatprep.mubr.f32.mxu0 %v874
      %1061 = vmatmul.mubr.f32.gmra.mxu0 %v430
      %v1062 = vpop.f32.mrf.mxu0
      %v1063 = vadd.f32 %v782, %v1062
      %v1064 = vpop.f32.mrf.mxu0
      %v1065 = vadd.f32 %v784, %v1064
      %1066 = vmatprep.mubr.f32.mxu0 %v877
      %1067 = vmatmul.mubr.f32.gmra.mxu0 %v432
      %v1068 = vpop.f32.mrf.mxu0
      %v1069 = vadd.f32 %v788, %v1068
      %v1070 = vpop.f32.mrf.mxu0
      %v1071 = vadd.f32 %v790, %v1070
      %1072 = vmatprep.mubr.f32.mxu0 %v880
      %1073 = vmatmul.mubr.f32.gmra.mxu0 %v434
      %v1074 = vpop.f32.mrf.mxu0
      %v1075 = vadd.f32 %v794, %v1074
      %v1076 = vpop.f32.mrf.mxu0
      %v1077 = vadd.f32 %v796, %v1076
      %1078 = vmatprep.mubr.f32.mxu0 %v883
      %1079 = vmatmul.mubr.f32.gmra.mxu0 %v436
      %v1080 = vpop.f32.mrf.mxu0
      %v1081 = vadd.f32 %v800, %v1080
      %v1082 = vpop.f32.mrf.mxu0
      %v1083 = vadd.f32 %v802, %v1082
      %1084 = vmatprep.mubr.f32.mxu0 %v886
      %1085 = vmatmul.mubr.f32.gmra.mxu0 %v438
      %v1086 = vpop.f32.mrf.mxu0
      %v1087 = vadd.f32 %v806, %v1086
      %v1088 = vpop.f32.mrf.mxu0
      %v1089 = vadd.f32 %v808, %v1088
      %1090 = vmatprep.mubr.f32.mxu0 %v889
      %1091 = vmatmul.mubr.f32.gmra.mxu0 %v440
      %v1092 = vpop.f32.mrf.mxu0
      %v1093 = vadd.f32 %v812, %v1092
      %v1094 = vpop.f32.mrf.mxu0
      %v1095 = vadd.f32 %v814, %v1094
      %1096 = vmatprep.mubr.f32.mxu0 %v892
      %1097 = vmatmul.mubr.f32.gmra.mxu0 %v442
      %v1098 = vpop.f32.mrf.mxu0
      %v1099 = vadd.f32 %v818, %v1098
      %v1100 = vpop.f32.mrf.mxu0
      %v1101 = vadd.f32 %v820, %v1100
      %1102 = vdwg.mxu0
      %v1103 = vld [vmem:[%s4] sm:$0xff]
      %v1104 = vld [vmem:[%s4 + $0x8] sm:$0xff]
      %v1105 = vld [vmem:[%s4 + $0x10] sm:$0xff]
      %v1106 = vld [vmem:[%s4 + $0x18] sm:$0xff]
      %v1107 = vld [vmem:[%s4 + $0x20] sm:$0xff]
      %v1108 = vld [vmem:[%s4 + $0x28] sm:$0xff]
      %v1109 = vld [vmem:[%s4 + $0x30] sm:$0xff]
      %v1110 = vld [vmem:[%s4 + $0x38] sm:$0xff]
      %v1111 = vld [vmem:[%s4 + $0x40] sm:$0xff]
      %v1112 = vld [vmem:[%s4 + $0x48] sm:$0xff]
      %v1113 = vld [vmem:[%s4 + $0x50] sm:$0xff]
      %v1114 = vld [vmem:[%s4 + $0x58] sm:$0xff]
      %v1115 = vld [vmem:[%s4 + $0x60] sm:$0xff]
      %v1116 = vld [vmem:[%s4 + $0x68] sm:$0xff]
      %v1117 = vld [vmem:[%s4 + $0x70] sm:$0xff]
      %v1118 = vld [vmem:[%s4 + $0x78] sm:$0xff]
      %v1119 = vld [vmem:[%s4 + $0x80] sm:$0xff]
      %v1120 = vld [vmem:[%s4 + $0x88] sm:$0xff]
      %v1121 = vld [vmem:[%s4 + $0x90] sm:$0xff]
      %v1122 = vld [vmem:[%s4 + $0x98] sm:$0xff]
      %v1123 = vld [vmem:[%s4 + $0xa0] sm:$0xff]
      %v1124 = vld [vmem:[%s4 + $0xa8] sm:$0xff]
      %v1125 = vld [vmem:[%s4 + $0xb0] sm:$0xff]
      %v1126 = vld [vmem:[%s4 + $0xb8] sm:$0xff]
      %1128 = vset.pattern.permute.xlu0 0
      %1129 = vperm.xlu0 %1128, %v1103
      %v1130 = vpop.permute.xlu0 %1129
      %1133 = vset.pattern.permute.xlu0 0
      %1134 = vperm.xlu0 %1133, %v1104
      %v1135 = vpop.permute.xlu0 %1134
      %1138 = vset.pattern.permute.xlu0 0
      %1139 = vperm.xlu0 %1138, %v1105
      %v1140 = vpop.permute.xlu0 %1139
      %1143 = vset.pattern.permute.xlu0 0
      %1144 = vperm.xlu0 %1143, %v1106
      %v1145 = vpop.permute.xlu0 %1144
      %1148 = vset.pattern.permute.xlu0 0
      %1149 = vperm.xlu0 %1148, %v1107
      %v1150 = vpop.permute.xlu0 %1149
      %1153 = vset.pattern.permute.xlu0 0
      %1154 = vperm.xlu0 %1153, %v1108
      %v1155 = vpop.permute.xlu0 %1154
      %1158 = vset.pattern.permute.xlu0 0
      %1159 = vperm.xlu0 %1158, %v1109
      %v1160 = vpop.permute.xlu0 %1159
      %1163 = vset.pattern.permute.xlu0 0
      %1164 = vperm.xlu0 %1163, %v1110
      %v1165 = vpop.permute.xlu0 %1164
      %1168 = vset.pattern.permute.xlu0 0
      %1169 = vperm.xlu0 %1168, %v1111
      %v1170 = vpop.permute.xlu0 %1169
      %1173 = vset.pattern.permute.xlu0 0
      %1174 = vperm.xlu0 %1173, %v1112
      %v1175 = vpop.permute.xlu0 %1174
      %1178 = vset.pattern.permute.xlu0 0
      %1179 = vperm.xlu0 %1178, %v1113
      %v1180 = vpop.permute.xlu0 %1179
      %1183 = vset.pattern.permute.xlu0 0
      %1184 = vperm.xlu0 %1183, %v1114
      %v1185 = vpop.permute.xlu0 %1184
      %1188 = vset.pattern.permute.xlu0 0
      %1189 = vperm.xlu0 %1188, %v1115
      %v1190 = vpop.permute.xlu0 %1189
      %1193 = vset.pattern.permute.xlu0 0
      %1194 = vperm.xlu0 %1193, %v1116
      %v1195 = vpop.permute.xlu0 %1194
      %1198 = vset.pattern.permute.xlu0 0
      %1199 = vperm.xlu0 %1198, %v1117
      %v1200 = vpop.permute.xlu0 %1199
      %1203 = vset.pattern.permute.xlu0 0
      %1204 = vperm.xlu0 %1203, %v1118
      %v1205 = vpop.permute.xlu0 %1204
      %1208 = vset.pattern.permute.xlu0 0
      %1209 = vperm.xlu0 %1208, %v1119
      %v1210 = vpop.permute.xlu0 %1209
      %1213 = vset.pattern.permute.xlu0 0
      %1214 = vperm.xlu0 %1213, %v1120
      %v1215 = vpop.permute.xlu0 %1214
      %1218 = vset.pattern.permute.xlu0 0
      %1219 = vperm.xlu0 %1218, %v1121
      %v1220 = vpop.permute.xlu0 %1219
      %1223 = vset.pattern.permute.xlu0 0
      %1224 = vperm.xlu0 %1223, %v1122
      %v1225 = vpop.permute.xlu0 %1224
      %1228 = vset.pattern.permute.xlu0 0
      %1229 = vperm.xlu0 %1228, %v1123
      %v1230 = vpop.permute.xlu0 %1229
      %1233 = vset.pattern.permute.xlu0 0
      %1234 = vperm.xlu0 %1233, %v1124
      %v1235 = vpop.permute.xlu0 %1234
      %1238 = vset.pattern.permute.xlu0 0
      %1239 = vperm.xlu0 %1238, %v1125
      %v1240 = vpop.permute.xlu0 %1239
      %1243 = vset.pattern.permute.xlu0 0
      %1244 = vperm.xlu0 %1243, %v1126
      %v1245 = vpop.permute.xlu0 %1244
      %v1247 = vadd.f32 %v961, %v1130
      %v1248 = vadd.f32 %v963, %v1130
      %v1249 = vadd.f32 %v967, %v1135
      %v1250 = vadd.f32 %v969, %v1135
      %v1251 = vadd.f32 %v973, %v1140
      %v1252 = vadd.f32 %v975, %v1140
      %v1253 = vadd.f32 %v979, %v1145
      %v1254 = vadd.f32 %v981, %v1145
      %v1255 = vadd.f32 %v985, %v1150
      %v1256 = vadd.f32 %v987, %v1150
      %v1257 = vadd.f32 %v991, %v1155
      %v1258 = vadd.f32 %v993, %v1155
      %v1259 = vadd.f32 %v997, %v1160
      %v1260 = vadd.f32 %v999, %v1160
      %v1261 = vadd.f32 %v1003, %v1165
      %v1262 = vadd.f32 %v1005, %v1165
      %v1263 = vadd.f32 %v1009, %v1170
      %v1264 = vadd.f32 %v1011, %v1170
      %v1265 = vadd.f32 %v1015, %v1175
      %v1266 = vadd.f32 %v1017, %v1175
      %v1267 = vadd.f32 %v1021, %v1180
      %v1268 = vadd.f32 %v1023, %v1180
      %v1269 = vadd.f32 %v1027, %v1185
      %v1270 = vadd.f32 %v1029, %v1185
      %v1271 = vadd.f32 %v1033, %v1190
      %v1272 = vadd.f32 %v1035, %v1190
      %v1273 = vadd.f32 %v1039, %v1195
      %v1274 = vadd.f32 %v1041, %v1195
      %v1275 = vadd.f32 %v1045, %v1200
      %v1276 = vadd.f32 %v1047, %v1200
      %v1277 = vadd.f32 %v1051, %v1205
      %v1278 = vadd.f32 %v1053, %v1205
      %v1279 = vadd.f32 %v1057, %v1210
      %v1280 = vadd.f32 %v1059, %v1210
      %v1281 = vadd.f32 %v1063, %v1215
      %v1282 = vadd.f32 %v1065, %v1215
      %v1283 = vadd.f32 %v1069, %v1220
      %v1284 = vadd.f32 %v1071, %v1220
      %v1285 = vadd.f32 %v1075, %v1225
      %v1286 = vadd.f32 %v1077, %v1225
      %v1287 = vadd.f32 %v1081, %v1230
      %v1288 = vadd.f32 %v1083, %v1230
      %v1289 = vadd.f32 %v1087, %v1235
      %v1290 = vadd.f32 %v1089, %v1235
      %v1291 = vadd.f32 %v1093, %v1240
      %v1292 = vadd.f32 %v1095, %v1240
      %v1293 = vadd.f32 %v1099, %v1245
      %v1294 = vadd.f32 %v1101, %v1245
      %v1295 = vmax.f32 %v1247, 0.0
      %v1296 = vmax.f32 %v1248, 0.0
      %v1297 = vmax.f32 %v1249, 0.0
      %v1298 = vmax.f32 %v1250, 0.0
      %v1299 = vmax.f32 %v1251, 0.0
      %v1300 = vmax.f32 %v1252, 0.0
      %v1301 = vmax.f32 %v1253, 0.0
      %v1302 = vmax.f32 %v1254, 0.0
      %v1303 = vmax.f32 %v1255, 0.0
      %v1304 = vmax.f32 %v1256, 0.0
      %v1305 = vmax.f32 %v1257, 0.0
      %v1306 = vmax.f32 %v1258, 0.0
      %v1307 = vmax.f32 %v1259, 0.0
      %v1308 = vmax.f32 %v1260, 0.0
      %v1309 = vmax.f32 %v1261, 0.0
      %v1310 = vmax.f32 %v1262, 0.0
      %v1311 = vmax.f32 %v1263, 0.0
      %v1312 = vmax.f32 %v1264, 0.0
      %v1313 = vmax.f32 %v1265, 0.0
      %v1314 = vmax.f32 %v1266, 0.0
      %v1315 = vmax.f32 %v1267, 0.0
      %v1316 = vmax.f32 %v1268, 0.0
      %v1317 = vmax.f32 %v1269, 0.0
      %v1318 = vmax.f32 %v1270, 0.0
      %v1319 = vmax.f32 %v1271, 0.0
      %v1320 = vmax.f32 %v1272, 0.0
      %v1321 = vmax.f32 %v1273, 0.0
      %v1322 = vmax.f32 %v1274, 0.0
      %v1323 = vmax.f32 %v1275, 0.0
      %v1324 = vmax.f32 %v1276, 0.0
      %v1325 = vmax.f32 %v1277, 0.0
      %v1326 = vmax.f32 %v1278, 0.0
      %v1327 = vmax.f32 %v1279, 0.0
      %v1328 = vmax.f32 %v1280, 0.0
      %v1329 = vmax.f32 %v1281, 0.0
      %v1330 = vmax.f32 %v1282, 0.0
      %v1331 = vmax.f32 %v1283, 0.0
      %v1332 = vmax.f32 %v1284, 0.0
      %v1333 = vmax.f32 %v1285, 0.0
      %v1334 = vmax.f32 %v1286, 0.0
      %v1335 = vmax.f32 %v1287, 0.0
      %v1336 = vmax.f32 %v1288, 0.0
      %v1337 = vmax.f32 %v1289, 0.0
      %v1338 = vmax.f32 %v1290, 0.0
      %v1339 = vmax.f32 %v1291, 0.0
      %v1340 = vmax.f32 %v1292, 0.0
      %v1341 = vmax.f32 %v1293, 0.0
      %v1342 = vmax.f32 %v1294, 0.0
      %1343 = vst [vmem:[%s298] sm:$0xff] %v1295
      %1344 = vst [vmem:[%s298 + $0x8] sm:$0xff] %v1296
      %1345 = vst [vmem:[%s298 + $0x10] sm:$0xff] %v1297
      %1346 = vst [vmem:[%s298 + $0x18] sm:$0xff] %v1298
      %1347 = vst [vmem:[%s298 + $0x20] sm:$0xff] %v1299
      %1348 = vst [vmem:[%s298 + $0x28] sm:$0xff] %v1300
      %1349 = vst [vmem:[%s298 + $0x30] sm:$0xff] %v1301
      %1350 = vst [vmem:[%s298 + $0x38] sm:$0xff] %v1302
      %1351 = vst [vmem:[%s298 + $0x40] sm:$0xff] %v1303
      %1352 = vst [vmem:[%s298 + $0x48] sm:$0xff] %v1304
      %1353 = vst [vmem:[%s298 + $0x50] sm:$0xff] %v1305
      %1354 = vst [vmem:[%s298 + $0x58] sm:$0xff] %v1306
      %1355 = vst [vmem:[%s298 + $0x60] sm:$0xff] %v1307
      %1356 = vst [vmem:[%s298 + $0x68] sm:$0xff] %v1308
      %1357 = vst [vmem:[%s298 + $0x70] sm:$0xff] %v1309
      %1358 = vst [vmem:[%s298 + $0x78] sm:$0xff] %v1310
      %1359 = vst [vmem:[%s298 + $0x80] sm:$0xff] %v1311
      %1360 = vst [vmem:[%s298 + $0x88] sm:$0xff] %v1312
      %1361 = vst [vmem:[%s298 + $0x90] sm:$0xff] %v1313
      %1362 = vst [vmem:[%s298 + $0x98] sm:$0xff] %v1314
      %1363 = vst [vmem:[%s298 + $0xa0] sm:$0xff] %v1315
      %1364 = vst [vmem:[%s298 + $0xa8] sm:$0xff] %v1316
      %1365 = vst [vmem:[%s298 + $0xb0] sm:$0xff] %v1317
      %1366 = vst [vmem:[%s298 + $0xb8] sm:$0xff] %v1318
      %1367 = vst [vmem:[%s298 + $0xc0] sm:$0xff] %v1319
      %1368 = vst [vmem:[%s298 + $0xc8] sm:$0xff] %v1320
      %1369 = vst [vmem:[%s298 + $0xd0] sm:$0xff] %v1321
      %1370 = vst [vmem:[%s298 + $0xd8] sm:$0xff] %v1322
      %1371 = vst [vmem:[%s298 + $0xe0] sm:$0xff] %v1323
      %1372 = vst [vmem:[%s298 + $0xe8] sm:$0xff] %v1324
      %1373 = vst [vmem:[%s298 + $0xf0] sm:$0xff] %v1325
      %1374 = vst [vmem:[%s298 + $0xf8] sm:$0xff] %v1326
      %1375 = vst [vmem:[%s298 + $0x100] sm:$0xff] %v1327
      %1376 = vst [vmem:[%s298 + $0x108] sm:$0xff] %v1328
      %1377 = vst [vmem:[%s298 + $0x110] sm:$0xff] %v1329
      %1378 = vst [vmem:[%s298 + $0x118] sm:$0xff] %v1330
      %1379 = vst [vmem:[%s298 + $0x120] sm:$0xff] %v1331
      %1380 = vst [vmem:[%s298 + $0x128] sm:$0xff] %v1332
      %1381 = vst [vmem:[%s298 + $0x130] sm:$0xff] %v1333
      %1382 = vst [vmem:[%s298 + $0x138] sm:$0xff] %v1334
      %1383 = vst [vmem:[%s298 + $0x140] sm:$0xff] %v1335
      %1384 = vst [vmem:[%s298 + $0x148] sm:$0xff] %v1336
      %1385 = vst [vmem:[%s298 + $0x150] sm:$0xff] %v1337
      %1386 = vst [vmem:[%s298 + $0x158] sm:$0xff] %v1338
      %1387 = vst [vmem:[%s298 + $0x160] sm:$0xff] %v1339
      %1388 = vst [vmem:[%s298 + $0x168] sm:$0xff] %v1340
      %1389 = vst [vmem:[%s298 + $0x170] sm:$0xff] %v1341
      %1390 = vst [vmem:[%s298 + $0x178] sm:$0xff] %v1342
      %s1391 = smul.u32 2, %s21
      %p1392 = scmp.lt.s32.totalorder %s20, 1
      %s1393 = scalar_select %p1392, %s20, 1
      %p1394 = scmp.lt.s32.totalorder %s1391, 1
      %s1395 = scalar_select %p1394, %s1391, 1
      %s1396 = smul.addr %s1393, 48
      %s1397 = sadd.s32 %s1395, %s1396
      %s1398 = smul.addr %s1397, 8
      %s1399 = scalar_lea.vmem %s5, %s1398
      // Predicated region
      $region41: #{_forward_impl.1} parent=39 // pred_check
        %p1400 = pneg %p167
      $region42: #{_forward_impl.1} parent=39 // pred_check_branch
        %1402 = sbr.rel (%p1400) target = $region44
      $region43: #{_forward_impl.1} parent=39 // pred_region
        %s1403 = smul.u32 2, %s21
      $region44: #{_forward_impl.1} parent=39 // pred_fallthru
        _
    $region40: #{_forward_impl.1} parent=5 // pred_fallthru
      _
    %p1404 = scmp.le.s32.totalorder 2, %s11
    // Predicated region
    $region45: #{_forward_impl.1} parent=5 // pred_check
      %p1405 = pneg %p1404
    $region46: #{_forward_impl.1} parent=5 // pred_check_branch
      %1407 = sbr.rel (%p1405) target = $region48
    $region47: #{_forward_impl.1} parent=5 // pred_region
      %s1408 = ssub.s32 %s11, 2
      // Predicated region
      $region49: #{_forward_impl.1} parent=47 // pred_check
        %p1409 = pneg %p173
      $region50: #{_forward_impl.1} parent=47 // pred_check_branch
        %1411 = sbr.rel (%p1409) target = $region52
      $region51: #{_forward_impl.1} parent=47 // pred_region
        %s1412 = smul.u32 2, %s23
        %p1413 = scmp.lt.s32.totalorder %s22, 1
        %s1414 = scalar_select %p1413, %s22, 1
        %p1415 = scmp.lt.s32.totalorder %s1412, 1
        %s1416 = scalar_select %p1415, %s1412, 1
        %s1417 = smul.addr %s1414, 48
        %s1418 = sadd.s32 %s1416, %s1417
        %s1419 = smul.addr %s1418, 8
        %s1420 = scalar_lea.vmem %s5, %s1419
      $region52: #{_forward_impl.1} parent=47 // pred_fallthru
        _
    $region48: #{_forward_impl.1} parent=5 // pred_fallthru
      _
  $region6: #{_forward_impl.1} parent=0 // loop_footer
    %s15 = sadd.s32 1, %s11
  $region7: #{_forward_impl.1} parent=0 // loop_footer_branch
    %10 = sbr.rel target = $region3
  $region8: #{_forward_impl.1} parent=0 // loop_exit
    _

</llo_original>
